<compile_context>
chip_gen: v5e
topology: v5e:2x2
jax: 0.10.0
libtpu: 0.0.40
codegen_flags: <defaults>
</compile_context>

<pallas_src>
import jax
import jax.numpy as jnp
from jax.experimental import pallas as pl
from jax.experimental.pallas import tpu as pltpu


# ---------------------------------------------------------------------------
# Kernel
# ---------------------------------------------------------------------------
def _mtl_forward_kernel(x_ref, w_ref, b_ref, out_ref):
    """x_ref: [tb, 128] f32, w_ref: [5, 128, 128] bf16, b_ref: [5, 128] f32,
    out_ref: [tb, 128] f32 (softmax probs in lanes [:num_classes], 0 elsewhere)."""
    cdt = w_ref.dtype                      # bf16 matmul operands
    h = x_ref[...].astype(cdt)             # single activation-cast point

    # Layers 0..3: encoder L1/L2/L3 + decoder fc1, each Linear + ReLU.
    # (Dropout(0.5) is identity at inference time.)
    for i in range(4):
        z = jnp.dot(h, w_ref[i], preferred_element_type=jnp.float32)
        z = z + b_ref[pl.ds(i, 1), :]      # f32 bias add
        h = jnp.maximum(z, 0.0).astype(cdt)

    # Layer 4: folded (fc2 @ classifier) -> logits. Padded lanes carry a
    # -1e30 bias so they vanish in the 128-lane softmax below.
    logits = jnp.dot(h, w_ref[4], preferred_element_type=jnp.float32)
    logits = logits + b_ref[pl.ds(4, 1), :]

    # Numerically stable row softmax (dim=1); reciprocal on the EUP slot.
    m = jnp.max(logits, axis=1, keepdims=True)
    e = jnp.exp(logits - m)
    s = jnp.sum(e, axis=1, keepdims=True)
    out_ref[...] = e * pl.reciprocal(s, approx=True)


# ---------------------------------------------------------------------------
# Host-side helpers
# ---------------------------------------------------------------------------
def pack_params(params, *, num_classes, pad=128, weight_dtype=jnp.bfloat16):
    """Pack 12 raw parameters into one weight slab and one bias slab.

    params = (w1,b1, w2,b2, w3,b3, wf1,bf1, wf2,bf2, wc,bc) with weights stored
    as [in_features, out_features] and biases as [1, out_features].
    """
    (w1, b1, w2, b2, w3, b3, wf1, bf1, wf2, bf2, wc, bc) = params

    # Fold fc2 and the classifier Linear (no nonlinearity between them).
    wf2c = wf2 @ wc                        # [dec_hidden, num_classes]
    bf2c = bf2 @ wc + bc                   # [1, num_classes]

    weights = [w1, w2, w3, wf1, wf2c]
    biases = [b1, b2, b3, bf1, bf2c]
    L = len(weights)

    w_slab = jnp.zeros((L, pad, pad), jnp.float32)
    b_slab = jnp.zeros((L, pad), jnp.float32)
    for i, w in enumerate(weights):
        assert w.shape[0] <= pad and w.shape[1] <= pad
        w_slab = w_slab.at[i, : w.shape[0], : w.shape[1]].set(w)
    for i, b in enumerate(biases):
        b_slab = b_slab.at[i, : b.shape[1]].set(b[0])
    # Padded logit lanes: huge negative bias so exp() underflows to 0 and the
    # 128-lane softmax equals the softmax over the real classes.
    b_slab = b_slab.at[L - 1, num_classes:].set(-1e30)

    return w_slab.astype(weight_dtype), b_slab


def _default_tb(B):
    """Batch tile: big (amortize per-step overhead), but >=2 grid steps when
    possible so both v7x TensorCores get work; capped at 2048 rows."""
    tb = B
    if B >= 16 and B % 16 == 0:
        tb = B // 2
    while tb > 2048 and tb % 16 == 0:
        tb //= 2
    return tb


def mtl_forward(x, w_slab, b_slab, *, num_classes, tb=None):
    """Full forward pass. Returns cls_out of shape [B, num_classes] (f32)."""
    B, F = x.shape
    L, P, _ = w_slab.shape
    assert F <= P

    # Pad batch to a multiple of 8 sublanes and features to P lanes.
    Bp = ((B + 7) // 8) * 8
    xp = jnp.zeros((Bp, P), jnp.float32).at[:B, :F].set(x.astype(jnp.float32))

    if tb is None:
        tb = _default_tb(Bp)
    assert Bp % tb == 0 and (tb % 8 == 0 or tb == Bp)

    out = pl.pallas_call(
        _mtl_forward_kernel,
        out_shape=jax.ShapeDtypeStruct((Bp, P), jnp.float32),
        grid=(Bp // tb,),
        in_specs=[
            pl.BlockSpec((tb, P), lambda i: (i, 0)),       # activations tile
            pl.BlockSpec((L, P, P), lambda i: (0, 0, 0)),  # packed weights
            pl.BlockSpec((L, P), lambda i: (0, 0)),        # packed biases
        ],
        out_specs=pl.BlockSpec((tb, P), lambda i: (i, 0)),  # lane-dense output
        compiler_params=pltpu.CompilerParams(
            dimension_semantics=("parallel",)),
    )(xp, w_slab, b_slab)

    return out[:B, :num_classes]


def _linear_params(key, fan_in, fan_out):
    """PyTorch nn.Linear-style init: U(-1/sqrt(fan_in), 1/sqrt(fan_in))."""
    kw, kb = jax.random.split(key)
    bound = 1.0 / float(jnp.sqrt(jnp.float32(fan_in)))
    w = jax.random.uniform(kw, (fan_in, fan_out), jnp.float32, -bound, bound)
    b = jax.random.uniform(kb, (1, fan_out), jnp.float32, -bound, bound)
    return w, b


def _reference_forward(x, params):
    """Pure-JAX f32 reference (unfused, unpadded) of the module's forward."""
    (w1, b1, w2, b2, w3, b3, wf1, bf1, wf2, bf2, wc, bc) = params
    h = jax.nn.relu(x @ w1 + b1)
    h = jax.nn.relu(h @ w2 + b2)
    enc = jax.nn.relu(h @ w3 + b3)
    d = jax.nn.relu(enc @ wf1 + bf1)        # Dropout = identity at inference
    d = d @ wf2 + bf2
    logits = d @ wc + bc
    return jax.nn.softmax(logits, axis=1)


# ---------------------------------------------------------------------------
# Demo / self-test
# ---------------------------------------------------------------------------
if __name__ == "__main__":
    input_size = 32
    encoder_hidden_size = 32
    num_classes, num_targets = 2, 2
    encoder_output_size = num_classes + num_targets * 2   # = 6 (required, see header)
    decoder_hidden_size = 32

    key = jax.random.PRNGKey(0)
    keys = jax.random.split(key, 8)

    # Encoder params.
    w1, b1 = _linear_params(keys[0], input_size, encoder_hidden_size)
    w2, b2 = _linear_params(keys[1], encoder_hidden_size, encoder_hidden_size)
    w3, b3 = _linear_params(keys[2], encoder_hidden_size, encoder_output_size)
    # Decoder params.
    wf1, bf1 = _linear_params(keys[3], encoder_output_size, decoder_hidden_size)
    wf2, bf2 = _linear_params(keys[4], decoder_hidden_size, num_classes + num_targets * 2)
    wc, bc = _linear_params(keys[5], num_classes + num_targets * 2, num_classes)
    params = (w1, b1, w2, b2, w3, b3, wf1, bf1, wf2, bf2, wc, bc)

    # Pack / fold once on the host.
    w_slab, b_slab = pack_params(params, num_classes=num_classes)

    # Batch of dense feature vectors (large enough to feed the MXU properly;
    # default tiling gives 2 parallel grid steps of 128 rows each).
    B = 256
    x = jax.random.normal(keys[6], (B, input_size), jnp.float32)

    cls_out = mtl_forward(x, w_slab, b_slab, num_classes=num_classes)
    cls_out = jax.block_until_ready(cls_out)

    assert cls_out.shape == (B, num_classes)
    assert bool(jnp.all(jnp.isfinite(cls_out)))
    # Rows sum to ~1 (approximate EUP reciprocal -> loose tolerance).
    assert bool(jnp.allclose(jnp.sum(cls_out, axis=1), 1.0, atol=1e-2))
    # Match the unfused f32 reference (bf16 operands + fold -> loose tolerance).
    ref = _reference_forward(x, params)
    assert bool(jnp.allclose(cls_out, ref, atol=5e-2)), float(
        jnp.max(jnp.abs(cls_out - ref)))

    print("KERNEL_OK")
</pallas_src>

<mosaic_0001>
module attributes {stable_mosaic.version = 11 : i64} {
  func.func @_mtl_forward_kernel(%arg0: i32, %arg1: memref<128x128xf32, #tpu.memory_space<vmem>>, %arg2: memref<5x128x128xbf16, #tpu.memory_space<vmem>>, %arg3: memref<5x128xf32, #tpu.memory_space<vmem>>, %arg4: memref<128x128xf32, #tpu.memory_space<vmem>>) attributes {dimension_semantics = [#tpu.dimension_semantics<parallel>], iteration_bounds = array<i64: 2>, scalar_prefetch = 0 : i64, scratch_operands = 0 : i64, tpu.core_type = #tpu.core_type<tc>, window_params = [{transform_indices = @transform_0, window_bounds = array<i64: 128, 128>}, {pipeline_mode = #tpu.pipeline_mode<synchronous>, transform_indices = @transform_1, window_bounds = array<i64: 5, 128, 128>}, {pipeline_mode = #tpu.pipeline_mode<synchronous>, transform_indices = @transform_2, window_bounds = array<i64: 5, 128>}, {transform_indices = @transform_3, window_bounds = array<i64: 128, 128>}]} {
    %c0 = arith.constant 0 : index
    %c0_0 = arith.constant 0 : index
    %0 = vector.load %arg1[%c0, %c0_0] : memref<128x128xf32, #tpu.memory_space<vmem>>, vector<128x128xf32>
    %1 = arith.truncf %0 : vector<128x128xf32> to vector<128x128xbf16>
    %c0_1 = arith.constant 0 : index
    %c0_2 = arith.constant 0 : index
    %c0_3 = arith.constant 0 : index
    %2 = vector.load %arg2[%c0_1, %c0_2, %c0_3] : memref<5x128x128xbf16, #tpu.memory_space<vmem>>, vector<1x128x128xbf16>
    %3 = vector.shape_cast %2 : vector<1x128x128xbf16> to vector<128x128xbf16>
    %cst = arith.constant dense<0.000000e+00> : vector<128x128xf32>
    %4 = tpu.matmul %1, %3, %cst {dimension_numbers = #tpu.dot_dimension_numbers<[1], [0], [0], [1], [0, 0, 1, 1], [], []>} : vector<128x128xbf16>, vector<128x128xbf16>, vector<128x128xf32> -> vector<128x128xf32>
    %c0_4 = arith.constant 0 : index
    %c0_5 = arith.constant 0 : index
    %5 = vector.load %arg3[%c0_4, %c0_5] : memref<5x128xf32, #tpu.memory_space<vmem>>, vector<1x128xf32>
    %6 = vector.broadcast %5 : vector<1x128xf32> to vector<128x128xf32>
    %7 = arith.addf %4, %6 : vector<128x128xf32>
    %cst_6 = arith.constant 0.000000e+00 : f32
    %8 = vector.broadcast %cst_6 : f32 to vector<128x128xf32>
    %9 = arith.maximumf %7, %8 : vector<128x128xf32>
    %10 = arith.truncf %9 : vector<128x128xf32> to vector<128x128xbf16>
    %c1 = arith.constant 1 : index
    %c0_7 = arith.constant 0 : index
    %c0_8 = arith.constant 0 : index
    %11 = vector.load %arg2[%c1, %c0_7, %c0_8] : memref<5x128x128xbf16, #tpu.memory_space<vmem>>, vector<1x128x128xbf16>
    %12 = vector.shape_cast %11 : vector<1x128x128xbf16> to vector<128x128xbf16>
    %cst_9 = arith.constant dense<0.000000e+00> : vector<128x128xf32>
    %13 = tpu.matmul %10, %12, %cst_9 {dimension_numbers = #tpu.dot_dimension_numbers<[1], [0], [0], [1], [0, 0, 1, 1], [], []>} : vector<128x128xbf16>, vector<128x128xbf16>, vector<128x128xf32> -> vector<128x128xf32>
    %c1_10 = arith.constant 1 : index
    %c0_11 = arith.constant 0 : index
    %14 = vector.load %arg3[%c1_10, %c0_11] : memref<5x128xf32, #tpu.memory_space<vmem>>, vector<1x128xf32>
    %15 = vector.broadcast %14 : vector<1x128xf32> to vector<128x128xf32>
    %16 = arith.addf %13, %15 : vector<128x128xf32>
    %cst_12 = arith.constant 0.000000e+00 : f32
    %17 = vector.broadcast %cst_12 : f32 to vector<128x128xf32>
    %18 = arith.maximumf %16, %17 : vector<128x128xf32>
    %19 = arith.truncf %18 : vector<128x128xf32> to vector<128x128xbf16>
    %c2 = arith.constant 2 : index
    %c0_13 = arith.constant 0 : index
    %c0_14 = arith.constant 0 : index
    %20 = vector.load %arg2[%c2, %c0_13, %c0_14] : memref<5x128x128xbf16, #tpu.memory_space<vmem>>, vector<1x128x128xbf16>
    %21 = vector.shape_cast %20 : vector<1x128x128xbf16> to vector<128x128xbf16>
    %cst_15 = arith.constant dense<0.000000e+00> : vector<128x128xf32>
    %22 = tpu.matmul %19, %21, %cst_15 {dimension_numbers = #tpu.dot_dimension_numbers<[1], [0], [0], [1], [0, 0, 1, 1], [], []>} : vector<128x128xbf16>, vector<128x128xbf16>, vector<128x128xf32> -> vector<128x128xf32>
    %c2_16 = arith.constant 2 : index
    %c0_17 = arith.constant 0 : index
    %23 = vector.load %arg3[%c2_16, %c0_17] : memref<5x128xf32, #tpu.memory_space<vmem>>, vector<1x128xf32>
    %24 = vector.broadcast %23 : vector<1x128xf32> to vector<128x128xf32>
    %25 = arith.addf %22, %24 : vector<128x128xf32>
    %cst_18 = arith.constant 0.000000e+00 : f32
    %26 = vector.broadcast %cst_18 : f32 to vector<128x128xf32>
    %27 = arith.maximumf %25, %26 : vector<128x128xf32>
    %28 = arith.truncf %27 : vector<128x128xf32> to vector<128x128xbf16>
    %c3 = arith.constant 3 : index
    %c0_19 = arith.constant 0 : index
    %c0_20 = arith.constant 0 : index
    %29 = vector.load %arg2[%c3, %c0_19, %c0_20] : memref<5x128x128xbf16, #tpu.memory_space<vmem>>, vector<1x128x128xbf16>
    %30 = vector.shape_cast %29 : vector<1x128x128xbf16> to vector<128x128xbf16>
    %cst_21 = arith.constant dense<0.000000e+00> : vector<128x128xf32>
    %31 = tpu.matmul %28, %30, %cst_21 {dimension_numbers = #tpu.dot_dimension_numbers<[1], [0], [0], [1], [0, 0, 1, 1], [], []>} : vector<128x128xbf16>, vector<128x128xbf16>, vector<128x128xf32> -> vector<128x128xf32>
    %c3_22 = arith.constant 3 : index
    %c0_23 = arith.constant 0 : index
    %32 = vector.load %arg3[%c3_22, %c0_23] : memref<5x128xf32, #tpu.memory_space<vmem>>, vector<1x128xf32>
    %33 = vector.broadcast %32 : vector<1x128xf32> to vector<128x128xf32>
    %34 = arith.addf %31, %33 : vector<128x128xf32>
    %cst_24 = arith.constant 0.000000e+00 : f32
    %35 = vector.broadcast %cst_24 : f32 to vector<128x128xf32>
    %36 = arith.maximumf %34, %35 : vector<128x128xf32>
    %37 = arith.truncf %36 : vector<128x128xf32> to vector<128x128xbf16>
    %c4 = arith.constant 4 : index
    %c0_25 = arith.constant 0 : index
    %c0_26 = arith.constant 0 : index
    %38 = vector.load %arg2[%c4, %c0_25, %c0_26] : memref<5x128x128xbf16, #tpu.memory_space<vmem>>, vector<1x128x128xbf16>
    %39 = vector.shape_cast %38 : vector<1x128x128xbf16> to vector<128x128xbf16>
    %cst_27 = arith.constant dense<0.000000e+00> : vector<128x128xf32>
    %40 = tpu.matmul %37, %39, %cst_27 {dimension_numbers = #tpu.dot_dimension_numbers<[1], [0], [0], [1], [0, 0, 1, 1], [], []>} : vector<128x128xbf16>, vector<128x128xbf16>, vector<128x128xf32> -> vector<128x128xf32>
    %c4_28 = arith.constant 4 : index
    %c0_29 = arith.constant 0 : index
    %41 = vector.load %arg3[%c4_28, %c0_29] : memref<5x128xf32, #tpu.memory_space<vmem>>, vector<1x128xf32>
    %42 = vector.broadcast %41 : vector<1x128xf32> to vector<128x128xf32>
    %43 = arith.addf %40, %42 : vector<128x128xf32>
    %cst_30 = arith.constant dense<0xFF800000> : vector<128xf32>
    %44 = vector.multi_reduction <maximumf>, %43, %cst_30 [1] : vector<128x128xf32> to vector<128xf32>
    %45 = vector.shape_cast %44 : vector<128xf32> to vector<128x1xf32>
    %46 = vector.broadcast %45 : vector<128x1xf32> to vector<128x128xf32>
    %47 = arith.subf %43, %46 : vector<128x128xf32>
    %48 = math.exp %47 : vector<128x128xf32>
    %cst_31 = arith.constant dense<0.000000e+00> : vector<128xf32>
    %49 = vector.multi_reduction <add>, %48, %cst_31 [1] : vector<128x128xf32> to vector<128xf32>
    %50 = vector.shape_cast %49 : vector<128xf32> to vector<128x1xf32>
    %51 = tpu.reciprocal %50 {approx = true} : vector<128x1xf32> -> vector<128x1xf32>
    %52 = vector.broadcast %51 : vector<128x1xf32> to vector<128x128xf32>
    %53 = arith.mulf %48, %52 : vector<128x128xf32>
    %c0_32 = arith.constant 0 : index
    %c0_33 = arith.constant 0 : index
    %54 = vector.load %arg4[%c0_32, %c0_33] : memref<128x128xf32, #tpu.memory_space<vmem>>, vector<128x128xf32>
    tpu.vector_store %arg4[%c0_32, %c0_33], %53 {strides = array<i32>} : memref<128x128xf32, #tpu.memory_space<vmem>>, vector<128x128xf32>,
    return
  }
  func.func @transform_0(%arg0: i32) -> (i32, i32) {
    %c0_i32 = arith.constant 0 : i32
    %c0_i32_0 = arith.constant 0 : i32
    return %arg0, %c0_i32 : i32, i32
  }
  func.func @transform_1(%arg0: i32) -> (i32, i32, i32) {
    %c0_i32 = arith.constant 0 : i32
    %c0_i32_0 = arith.constant 0 : i32
    %c0_i32_1 = arith.constant 0 : i32
    %c0_i32_2 = arith.constant 0 : i32
    return %c0_i32, %c0_i32_0, %c0_i32_1 : i32, i32, i32
  }
  func.func @transform_2(%arg0: i32) -> (i32, i32) {
    %c0_i32 = arith.constant 0 : i32
    %c0_i32_0 = arith.constant 0 : i32
    %c0_i32_1 = arith.constant 0 : i32
    return %c0_i32, %c0_i32_0 : i32, i32
  }
  func.func @transform_3(%arg0: i32) -> (i32, i32) {
    %c0_i32 = arith.constant 0 : i32
    %c0_i32_0 = arith.constant 0 : i32
    return %arg0, %c0_i32 : i32, i32
  }
}

</mosaic_0001>

<llo_original>
// kernel: tpu_custom_call.1
$region0: #{tpu_custom_call.1}
  #allocation0 [shape = 'u32[]', space=smem, size = 0x4, offset = 0x4, fixed_abs, tag = 'smem constant byte address 0x4 - core index']
  #allocation1 [shape = 'u32[72,128]{1,0:T(1,128)}', space=vmem, size = 0x9000, scoped, tag = 'internal scratch']
  %s0 = inlined_call_operand.hbm [shape: f32[256,128], index: 0, kind: input, shape index: {}]
  %s1 = inlined_call_operand.hbm [shape: bf16[5,128,128], index: 1, kind: input, shape index: {}]
  %s2 = inlined_call_operand.hbm [shape: f32[5,128], index: 2, kind: input, shape index: {}]
  %s3 = inlined_call_operand.hbm [shape: f32[256,128], index: 3, kind: output, shape index: {}]
  %s4 = sld [smem:[#allocation0]]
  $region57: #{tpu_custom_call.1} parent=0
    _
  %s6 = ssub.s32 1, %s4
  %s7 = scalar_select 0, %s6, %s4
  $region1: #{tpu_custom_call.1} parent=0
    #allocation2 [shape = 'u8[131072]{0}', space=vmem, size = 0x20000, scoped, tag = 'input window, operand 0']
    #allocation3 [shape = 's32[2]{0}', space=sflag, size = 0x8, scoped, tag = 'scoped memory for tpu_custom_call.1']
    #allocation4 [shape = 's32[2]{0}', space=sflag, size = 0x8, scoped, tag = 'scoped memory for tpu_custom_call.1']
    #allocation5 [shape = 'u8[163840]{0}', space=vmem, size = 0x28000, scoped, tag = 'input window, operand 1, single buffered']
    #allocation6 [shape = 's32[1]{0}', space=sflag, size = 0x4, scoped, tag = 'scoped memory for tpu_custom_call.1']
    #allocation7 [shape = 'u8[4096]{0}', space=vmem, size = 0x1000, scoped, tag = 'input window, operand 2, single buffered']
    #allocation8 [shape = 'u8[131072]{0}', space=vmem, size = 0x20000, scoped, tag = 'output window, operand 0']
    %8 = vsyncpa [#allocation3], 0
    %s9 = scalar_lea.sflag [#allocation3], 1
    %10 = vsyncpa %s9, 0
    %11 = vsyncpa [#allocation6], 0
    %12 = vsyncpa [#allocation4], 0
    %s13 = scalar_lea.sflag [#allocation4], 1
    %14 = vsyncpa %s13, 0
    loop: start=0, step=1, limit=4
    $region2: #{tpu_custom_call.1} parent=1 // loop_pre_header
      _
    $region3: #{tpu_custom_call.1} parent=1 // loop_header
      %s16 = sphi 0, %s20
      %p17 = scmp.ge.s32.totalorder %s16, 4
      %s26 = sphi 0, %s28
      %s29 = sphi 0, %s26
      %s30 = sphi 0, %s29
      %s46 = sphi 0, %s30
      %s50 = sphi 0, %s50
      %s52 = sphi 0, %s50
      %s53 = sphi 0, %s52
      %s67 = sphi 0, %s53
      %s71 = sphi 0, %s71
      %s73 = sphi 0, %s71
      %s74 = sphi 0, %s73
      %s88 = sphi 0, %s74
      %s94 = sphi 0, %s96
      %s97 = sphi 0, %s94
      %s98 = sphi 0, %s97
      %s114 = sphi 0, %s98
    $region4: #{tpu_custom_call.1} parent=1 // loop_header_branch
      %19 = sbr.rel (%p17) target = $region8
    $region5: #{tpu_custom_call.1} parent=1 // loop_body
      %s21 = ssub.s32 %s16, 1
      %s22 = ssub.s32 %s16, 2
      %s23 = sadd.s32 %s16, 1
      %s24 = ssub.s32 %s16, %s23
      %p25 = scmp.eq.s32.totalorder %s24, 0
      %s27 = sadd.s32 %s26, 1
      %s28 = scalar_select %p25, %s26, %s27
      %p31 = pneg %p25
      %p32 = scmp.eq.s32.totalorder %s16, 1
      %p33 = por %p31, %p32
      %p34 = scmp.ne.s32.totalorder %s26, %s29
      %p35 = scmp.eq.s32.totalorder %s16, 0
      %p36 = por %p34, %p35
      %p37 = scmp.ne.s32.totalorder %s26, %s29
      %p38 = scmp.eq.s32.totalorder %s21, 1
      %p39 = por %p37, %p38
      %p40 = scmp.ne.s32.totalorder %s29, %s30
      %p41 = scmp.eq.s32.totalorder %s21, 0
      %p42 = por %p40, %p41
      %p43 = scmp.ne.s32.totalorder %s29, %s30
      %p44 = scmp.eq.s32.totalorder %s22, 1
      %p45 = por %p43, %p44
      %p47 = scmp.ne.s32.totalorder %s30, %s46
      %p48 = scmp.eq.s32.totalorder %s22, 0
      %p49 = por %p47, %p48
      %s51 = sadd.s32 %s50, 1
      %p54 = scmp.eq.s32.totalorder %s16, 1
      %p55 = scmp.ne.s32.totalorder %s50, %s52
      %p56 = scmp.eq.s32.totalorder %s16, 0
      %p57 = por %p55, %p56
      %p58 = scmp.ne.s32.totalorder %s50, %s52
      %p59 = scmp.eq.s32.totalorder %s21, 1
      %p60 = por %p58, %p59
      %p61 = scmp.ne.s32.totalorder %s52, %s53
      %p62 = scmp.eq.s32.totalorder %s21, 0
      %p63 = por %p61, %p62
      %p64 = scmp.ne.s32.totalorder %s52, %s53
      %p65 = scmp.eq.s32.totalorder %s22, 1
      %p66 = por %p64, %p65
      %p68 = scmp.ne.s32.totalorder %s53, %s67
      %p69 = scmp.eq.s32.totalorder %s22, 0
      %p70 = por %p68, %p69
      %s72 = sadd.s32 %s71, 1
      %p75 = scmp.eq.s32.totalorder %s16, 1
      %p76 = scmp.ne.s32.totalorder %s71, %s73
      %p77 = scmp.eq.s32.totalorder %s16, 0
      %p78 = por %p76, %p77
      %p79 = scmp.ne.s32.totalorder %s71, %s73
      %p80 = scmp.eq.s32.totalorder %s21, 1
      %p81 = por %p79, %p80
      %p82 = scmp.ne.s32.totalorder %s73, %s74
      %p83 = scmp.eq.s32.totalorder %s21, 0
      %p84 = por %p82, %p83
      %p85 = scmp.ne.s32.totalorder %s73, %s74
      %p86 = scmp.eq.s32.totalorder %s22, 1
      %p87 = por %p85, %p86
      %p89 = scmp.ne.s32.totalorder %s74, %s88
      %p90 = scmp.eq.s32.totalorder %s22, 0
      %p91 = por %p89, %p90
      %s92 = ssub.s32 %s16, %s23
      %p93 = scmp.eq.s32.totalorder %s92, 0
      %s95 = sadd.s32 %s94, 1
      %s96 = scalar_select %p93, %s94, %s95
      %p99 = pneg %p93
      %p100 = scmp.eq.s32.totalorder %s16, 1
      %p101 = por %p99, %p100
      %p102 = scmp.ne.s32.totalorder %s94, %s97
      %p103 = scmp.eq.s32.totalorder %s16, 0
      %p104 = por %p102, %p103
      %p105 = scmp.ne.s32.totalorder %s94, %s97
      %p106 = scmp.eq.s32.totalorder %s21, 1
      %p107 = por %p105, %p106
      %p108 = scmp.ne.s32.totalorder %s97, %s98
      %p109 = scmp.eq.s32.totalorder %s21, 0
      %p110 = por %p108, %p109
      %p111 = scmp.ne.s32.totalorder %s97, %s98
      %p112 = scmp.eq.s32.totalorder %s22, 1
      %p113 = por %p111, %p112
      %p115 = scmp.ne.s32.totalorder %s98, %s114
      %p116 = scmp.eq.s32.totalorder %s22, 0
      %p117 = por %p115, %p116
      %p118 = scmp.le.s32.totalorder 1, %s16
      %p119 = scmp.lt.s32.totalorder %s16, 3
      %p120 = pnand %p118, %p119
      %p121 = pneg %p120
      // Predicated region
      $region9: #{tpu_custom_call.1} parent=5 // pred_check
        _
      $region10: #{tpu_custom_call.1} parent=5 // pred_check_branch
        %123 = sbr.rel (%p120) target = $region12
      $region11: #{tpu_custom_call.1} parent=5 // pred_region
        %s124 = ssub.s32 %s16, 1
        // Predicated region
        $region13: #{tpu_custom_call.1} parent=11 // pred_check
          %p125 = pneg %p63
        $region14: #{tpu_custom_call.1} parent=11 // pred_check_branch
          %127 = sbr.rel (%p125) target = $region16
        $region15: #{tpu_custom_call.1} parent=11 // pred_region
          %129 = vsyncadd [#allocation6], 0
          %s130 = sshll.u32 %s1, 4
          %s131 = int_to_ptr.hbm [resolvable:$true] %s130
          %s132 = sshll.u32 [#allocation5], 4
          %s133 = int_to_ptr.vmem [resolvable:$true] %s132
          %138 = dma.hbm_to_vmem [thread:$0]  %s131, 5120, %s133, [#allocation6], 64, 64, 4
        $region16: #{tpu_custom_call.1} parent=11 // pred_fallthru
          _
        // Predicated region
        $region17: #{tpu_custom_call.1} parent=11 // pred_check
          %p139 = pneg %p84
        $region18: #{tpu_custom_call.1} parent=11 // pred_check_branch
          %141 = sbr.rel (%p139) target = $region20
        $region19: #{tpu_custom_call.1} parent=11 // pred_region
          %143 = vsyncadd [#allocation6], 0
          %s145 = sshll.u32 %s2, 4
          %s146 = int_to_ptr.hbm [resolvable:$true] %s145
          %s147 = sshll.u32 [#allocation7], 4
          %s148 = int_to_ptr.vmem [resolvable:$true] %s147
          %150 = dma.hbm_to_vmem [thread:$0]  %s146, 128, %s148, [#allocation6]
        $region20: #{tpu_custom_call.1} parent=11 // pred_fallthru
          _
      $region12: #{tpu_custom_call.1} parent=5 // pred_fallthru
        _
      %p151 = scmp.lt.s32.totalorder %s16, 2
      // Predicated region
      $region21: #{tpu_custom_call.1} parent=5 // pred_check
        %p152 = pneg %p151
      $region22: #{tpu_custom_call.1} parent=5 // pred_check_branch
        %154 = sbr.rel (%p152) target = $region24
      $region23: #{tpu_custom_call.1} parent=5 // pred_region
        // Predicated region
        $region25: #{tpu_custom_call.1} parent=23 // pred_check
          %p155 = pneg %p36
        $region26: #{tpu_custom_call.1} parent=23 // pred_check_branch
          %157 = sbr.rel (%p155) target = $region28
        $region27: #{tpu_custom_call.1} parent=23 // pred_region
          %s158 = sand.u32 %s26, 1
          %s159 = scalar_lea.sflag [#allocation3], %s158
          %s160 = sand.u32 %s26, 1
          %s161 = smul.addr %s160, 128
          %s162 = scalar_lea.vmem [#allocation2], %s161
          %s163 = smul.u32 16, %s16
          %165 = vsyncadd %s159, 0
          %s166 = smul.addr %s163, 8
          %s167 = scalar_lea.hbm %s0, %s166
          %s168 = sshll.u32 %s167, 4
          %s169 = int_to_ptr.hbm [resolvable:$true] %s168
          %s170 = sshll.u32 %s162, 4
          %s171 = int_to_ptr.vmem [resolvable:$true] %s170
          %176 = dma.hbm_to_vmem [thread:$0]  %s169, 2048, %s171, %s159, 128, 128, 8
        $region28: #{tpu_custom_call.1} parent=23 // pred_fallthru
          _
      $region24: #{tpu_custom_call.1} parent=5 // pred_fallthru
        _
      %p177 = scmp.le.s32.totalorder 1, %s16
      %p178 = scmp.lt.s32.totalorder %s16, 3
      %p179 = pnand %p177, %p178
      %p180 = pneg %p179
      // Predicated region
      $region29: #{tpu_custom_call.1} parent=5 // pred_check
        _
      $region30: #{tpu_custom_call.1} parent=5 // pred_check_branch
        %182 = sbr.rel (%p179) target = $region32
      $region31: #{tpu_custom_call.1} parent=5 // pred_region
        %s183 = ssub.s32 %s16, 1
        %s184 = sand.u32 %s29, 1
        %s185 = scalar_lea.sflag [#allocation3], %s184
        %s186 = sand.u32 %s29, 1
        %s187 = smul.addr %s186, 128
        %s188 = scalar_lea.vmem [#allocation2], %s187
        // Predicated region
        $region33: #{tpu_custom_call.1} parent=31 // pred_check
          %p189 = pneg %p42
        $region34: #{tpu_custom_call.1} parent=31 // pred_check_branch
          %191 = sbr.rel (%p189) target = $region36
        $region35: #{tpu_custom_call.1} parent=31 // pred_region
          %193 = dma.done %s185, 2048
        $region36: #{tpu_custom_call.1} parent=31 // pred_fallthru
          _
        // Predicated region
        $region37: #{tpu_custom_call.1} parent=31 // pred_check
          %p194 = pneg %p63
        $region38: #{tpu_custom_call.1} parent=31 // pred_check_branch
          %196 = sbr.rel (%p194) target = $region40
        $region39: #{tpu_custom_call.1} parent=31 // pred_region
          %198 = dma.done [#allocation6], 5120
        $region40: #{tpu_custom_call.1} parent=31 // pred_fallthru
          _
        // Predicated region
        $region41: #{tpu_custom_call.1} parent=31 // pred_check
          %p199 = pneg %p84
        $region42: #{tpu_custom_call.1} parent=31 // pred_check_branch
          %201 = sbr.rel (%p199) target = $region44
        $region43: #{tpu_custom_call.1} parent=31 // pred_region
          %203 = dma.done [#allocation6], 128
        $region44: #{tpu_custom_call.1} parent=31 // pred_fallthru
          _
        %s204 = sand.u32 %s29, 1
        %s205 = scalar_lea.sflag [#allocation3], %s204
        %s206 = sand.u32 %s29, 1
        %s207 = smul.addr %s206, 128
        %s208 = scalar_lea.vmem [#allocation2], %s207
        %p209 = pneg %p42
        %p210 = pneg %p39
        %p211 = pneg %p63
        %p212 = pneg %p60
        %p213 = pneg %p84
        %p214 = pneg %p81
        %p215 = pneg %p110
        %p216 = pneg %p107
        %s217 = sand.u32 %s97, 1
        %s218 = scalar_lea.sflag [#allocation4], %s217
        %s219 = sand.u32 %s97, 1
        %s220 = smul.addr %s219, 128
        %s221 = scalar_lea.vmem [#allocation8], %s220
        %s222 = smul.u32 16, %s21
        %s223 = smul.u32 16, %s21
        %v224 = vld [vmem:[%s188] sm:$0xff]
        %v225 = vld [vmem:[%s188 + $0x8] sm:$0xff]
        %v226 = vld [vmem:[%s188 + $0x10] sm:$0xff]
        %v227 = vld [vmem:[%s188 + $0x18] sm:$0xff]
        %v228 = vld [vmem:[%s188 + $0x20] sm:$0xff]
        %v229 = vld [vmem:[%s188 + $0x28] sm:$0xff]
        %v230 = vld [vmem:[%s188 + $0x30] sm:$0xff]
        %v231 = vld [vmem:[%s188 + $0x38] sm:$0xff]
        %v232 = vld [vmem:[%s188 + $0x40] sm:$0xff]
        %v233 = vld [vmem:[%s188 + $0x48] sm:$0xff]
        %v234 = vld [vmem:[%s188 + $0x50] sm:$0xff]
        %v235 = vld [vmem:[%s188 + $0x58] sm:$0xff]
        %v236 = vld [vmem:[%s188 + $0x60] sm:$0xff]
        %v237 = vld [vmem:[%s188 + $0x68] sm:$0xff]
        %v238 = vld [vmem:[%s188 + $0x70] sm:$0xff]
        %v239 = vld [vmem:[%s188 + $0x78] sm:$0xff]
        %v240 = vpack.c.bf16 %v225, %v224
        %v241 = vpack.c.bf16 %v227, %v226
        %v242 = vpack.c.bf16 %v229, %v228
        %v243 = vpack.c.bf16 %v231, %v230
        %v244 = vpack.c.bf16 %v233, %v232
        %v245 = vpack.c.bf16 %v235, %v234
        %v246 = vpack.c.bf16 %v237, %v236
        %v247 = vpack.c.bf16 %v239, %v238
        %v248 = vld [vmem:[#allocation5] sm:$0xf]
        %v249 = vld [vmem:[#allocation5 + $0x4] sm:$0xf]
        %v250 = vld [vmem:[#allocation5 + $0x8] sm:$0xf]
        %v251 = vld [vmem:[#allocation5 + $0xc] sm:$0xf]
        %v252 = vld [vmem:[#allocation5 + $0x10] sm:$0xf]
        %v253 = vld [vmem:[#allocation5 + $0x14] sm:$0xf]
        %v254 = vld [vmem:[#allocation5 + $0x18] sm:$0xf]
        %v255 = vld [vmem:[#allocation5 + $0x1c] sm:$0xf]
        %v256 = vld [vmem:[#allocation5 + $0x20] sm:$0xf]
        %v257 = vld [vmem:[#allocation5 + $0x24] sm:$0xf]
        %v258 = vld [vmem:[#allocation5 + $0x28] sm:$0xf]
        %v259 = vld [vmem:[#allocation5 + $0x2c] sm:$0xf]
        %v260 = vld [vmem:[#allocation5 + $0x30] sm:$0xf]
        %v261 = vld [vmem:[#allocation5 + $0x34] sm:$0xf]
        %v262 = vld [vmem:[#allocation5 + $0x38] sm:$0xf]
        %v263 = vld [vmem:[#allocation5 + $0x3c] sm:$0xf]
        %v264 = vld [vmem:[#allocation7] sm:$0x1]
        %v265 = vperm.slane %v264, 0
        %v282 = vunpack.c.l.b16 %v248
        %v283 = vunpack.c.l.b16 %v249
        %v284 = vunpack.c.l.b16 %v250
        %v285 = vunpack.c.l.b16 %v251
        %v286 = vunpack.c.l.b16 %v252
        %v287 = vunpack.c.l.b16 %v253
        %v288 = vunpack.c.l.b16 %v254
        %v289 = vunpack.c.l.b16 %v255
        %v290 = vunpack.c.l.b16 %v256
        %v291 = vunpack.c.l.b16 %v257
        %v292 = vunpack.c.l.b16 %v258
        %v293 = vunpack.c.l.b16 %v259
        %v294 = vunpack.c.l.b16 %v260
        %v295 = vunpack.c.l.b16 %v261
        %v296 = vunpack.c.l.b16 %v262
        %v297 = vunpack.c.l.b16 %v263
        %v298 = vpack.c.b16 %v283, %v282
        %v299 = vpack.c.b16 %v285, %v284
        %v300 = vpack.c.b16 %v287, %v286
        %v301 = vpack.c.b16 %v289, %v288
        %v302 = vpack.c.b16 %v291, %v290
        %v303 = vpack.c.b16 %v293, %v292
        %v304 = vpack.c.b16 %v295, %v294
        %v305 = vpack.c.b16 %v297, %v296
        %314 = vmatpush.bf16.msra.mxu0 %v305
        %315 = vmatpush.bf16.msra.mxu0 %v304
        %316 = vmatpush.bf16.msra.mxu0 %v303
        %317 = vmatpush.bf16.msra.mxu0 %v302
        %318 = vmatpush.bf16.msra.mxu0 %v301
        %319 = vmatpush.bf16.msra.mxu0 %v300
        %320 = vmatpush.bf16.msra.mxu0 %v299
        %321 = vmatpush.bf16.msra.mxu0 %v298
        %322 = vmatmul.bf16.gmra.mxu0 %v240
        %v323 = vpop.f32.mrf.mxu0
        %v324 = vadd.f32 %v265, %v323
        %v325 = vpop.f32.mrf.mxu0
        %v326 = vadd.f32 %v265, %v325
        %327 = vmatmul.bf16.gmra.mxu0 %v241
        %v328 = vpop.f32.mrf.mxu0
        %v329 = vadd.f32 %v265, %v328
        %v330 = vpop.f32.mrf.mxu0
        %v331 = vadd.f32 %v265, %v330
        %332 = vmatmul.bf16.gmra.mxu0 %v242
        %v333 = vpop.f32.mrf.mxu0
        %v334 = vadd.f32 %v265, %v333
        %v335 = vpop.f32.mrf.mxu0
        %v336 = vadd.f32 %v265, %v335
        %337 = vmatmul.bf16.gmra.mxu0 %v243
        %v338 = vpop.f32.mrf.mxu0
        %v339 = vadd.f32 %v265, %v338
        %v340 = vpop.f32.mrf.mxu0
        %v341 = vadd.f32 %v265, %v340
        %342 = vmatmul.bf16.gmra.mxu0 %v244
        %v343 = vpop.f32.mrf.mxu0
        %v344 = vadd.f32 %v265, %v343
        %v345 = vpop.f32.mrf.mxu0
        %v346 = vadd.f32 %v265, %v345
        %347 = vmatmul.bf16.gmra.mxu0 %v245
        %v348 = vpop.f32.mrf.mxu0
        %v349 = vadd.f32 %v265, %v348
        %v350 = vpop.f32.mrf.mxu0
        %v351 = vadd.f32 %v265, %v350
        %352 = vmatmul.bf16.gmra.mxu0 %v246
        %v353 = vpop.f32.mrf.mxu0
        %v354 = vadd.f32 %v265, %v353
        %v355 = vpop.f32.mrf.mxu0
        %v356 = vadd.f32 %v265, %v355
        %357 = vmatmul.bf16.gmra.mxu0 %v247
        %v358 = vpop.f32.mrf.mxu0
        %v359 = vadd.f32 %v265, %v358
        %v360 = vpop.f32.mrf.mxu0
        %v361 = vadd.f32 %v265, %v360
        %362 = vdwg.mxu0
        %v363 = vmax.f32 %v324, 0.0
        %v364 = vmax.f32 %v326, 0.0
        %v365 = vmax.f32 %v329, 0.0
        %v366 = vmax.f32 %v331, 0.0
        %v367 = vmax.f32 %v334, 0.0
        %v368 = vmax.f32 %v336, 0.0
        %v369 = vmax.f32 %v339, 0.0
        %v370 = vmax.f32 %v341, 0.0
        %v371 = vmax.f32 %v344, 0.0
        %v372 = vmax.f32 %v346, 0.0
        %v373 = vmax.f32 %v349, 0.0
        %v374 = vmax.f32 %v351, 0.0
        %v375 = vmax.f32 %v354, 0.0
        %v376 = vmax.f32 %v356, 0.0
        %v377 = vmax.f32 %v359, 0.0
        %v378 = vmax.f32 %v361, 0.0
        %v379 = vpack.c.bf16 %v364, %v363
        %v380 = vpack.c.bf16 %v366, %v365
        %v381 = vpack.c.bf16 %v368, %v367
        %v382 = vpack.c.bf16 %v370, %v369
        %v383 = vpack.c.bf16 %v372, %v371
        %v384 = vpack.c.bf16 %v374, %v373
        %v385 = vpack.c.bf16 %v376, %v375
        %v386 = vpack.c.bf16 %v378, %v377
        %s387 = scalar_lea.vmem [#allocation5], 64
        %v388 = vld [vmem:[%s387] sm:$0xf]
        %v389 = vld [vmem:[%s387 + $0x4] sm:$0xf]
        %v390 = vld [vmem:[%s387 + $0x8] sm:$0xf]
        %v391 = vld [vmem:[%s387 + $0xc] sm:$0xf]
        %v392 = vld [vmem:[%s387 + $0x10] sm:$0xf]
        %v393 = vld [vmem:[%s387 + $0x14] sm:$0xf]
        %v394 = vld [vmem:[%s387 + $0x18] sm:$0xf]
        %v395 = vld [vmem:[%s387 + $0x1c] sm:$0xf]
        %v396 = vld [vmem:[%s387 + $0x20] sm:$0xf]
        %v397 = vld [vmem:[%s387 + $0x24] sm:$0xf]
        %v398 = vld [vmem:[%s387 + $0x28] sm:$0xf]
        %v399 = vld [vmem:[%s387 + $0x2c] sm:$0xf]
        %v400 = vld [vmem:[%s387 + $0x30] sm:$0xf]
        %v401 = vld [vmem:[%s387 + $0x34] sm:$0xf]
        %v402 = vld [vmem:[%s387 + $0x38] sm:$0xf]
        %v403 = vld [vmem:[%s387 + $0x3c] sm:$0xf]
        %v404 = vld [vmem:[#allocation7 + $0x1] sm:$0x1]
        %v405 = vperm.slane %v404, 0
        %v422 = vunpack.c.l.b16 %v388
        %v423 = vunpack.c.l.b16 %v389
        %v424 = vunpack.c.l.b16 %v390
        %v425 = vunpack.c.l.b16 %v391
        %v426 = vunpack.c.l.b16 %v392
        %v427 = vunpack.c.l.b16 %v393
        %v428 = vunpack.c.l.b16 %v394
        %v429 = vunpack.c.l.b16 %v395
        %v430 = vunpack.c.l.b16 %v396
        %v431 = vunpack.c.l.b16 %v397
        %v432 = vunpack.c.l.b16 %v398
        %v433 = vunpack.c.l.b16 %v399
        %v434 = vunpack.c.l.b16 %v400
        %v435 = vunpack.c.l.b16 %v401
        %v436 = vunpack.c.l.b16 %v402
        %v437 = vunpack.c.l.b16 %v403
        %v438 = vpack.c.b16 %v423, %v422
        %v439 = vpack.c.b16 %v425, %v424
        %v440 = vpack.c.b16 %v427, %v426
        %v441 = vpack.c.b16 %v429, %v428
        %v442 = vpack.c.b16 %v431, %v430
        %v443 = vpack.c.b16 %v433, %v432
        %v444 = vpack.c.b16 %v435, %v434
        %v445 = vpack.c.b16 %v437, %v436
        %454 = vmatpush.bf16.msra.mxu0 %v445
        %455 = vmatpush.bf16.msra.mxu0 %v444
        %456 = vmatpush.bf16.msra.mxu0 %v443
        %457 = vmatpush.bf16.msra.mxu0 %v442
        %458 = vmatpush.bf16.msra.mxu0 %v441
        %459 = vmatpush.bf16.msra.mxu0 %v440
        %460 = vmatpush.bf16.msra.mxu0 %v439
        %461 = vmatpush.bf16.msra.mxu0 %v438
        %462 = vmatmul.bf16.gmra.mxu0 %v379
        %v463 = vpop.f32.mrf.mxu0
        %v464 = vadd.f32 %v405, %v463
        %v465 = vpop.f32.mrf.mxu0
        %v466 = vadd.f32 %v405, %v465
        %467 = vmatmul.bf16.gmra.mxu0 %v380
        %v468 = vpop.f32.mrf.mxu0
        %v469 = vadd.f32 %v405, %v468
        %v470 = vpop.f32.mrf.mxu0
        %v471 = vadd.f32 %v405, %v470
        %472 = vmatmul.bf16.gmra.mxu0 %v381
        %v473 = vpop.f32.mrf.mxu0
        %v474 = vadd.f32 %v405, %v473
        %v475 = vpop.f32.mrf.mxu0
        %v476 = vadd.f32 %v405, %v475
        %477 = vmatmul.bf16.gmra.mxu0 %v382
        %v478 = vpop.f32.mrf.mxu0
        %v479 = vadd.f32 %v405, %v478
        %v480 = vpop.f32.mrf.mxu0
        %v481 = vadd.f32 %v405, %v480
        %482 = vmatmul.bf16.gmra.mxu0 %v383
        %v483 = vpop.f32.mrf.mxu0
        %v484 = vadd.f32 %v405, %v483
        %v485 = vpop.f32.mrf.mxu0
        %v486 = vadd.f32 %v405, %v485
        %487 = vmatmul.bf16.gmra.mxu0 %v384
        %v488 = vpop.f32.mrf.mxu0
        %v489 = vadd.f32 %v405, %v488
        %v490 = vpop.f32.mrf.mxu0
        %v491 = vadd.f32 %v405, %v490
        %492 = vmatmul.bf16.gmra.mxu0 %v385
        %v493 = vpop.f32.mrf.mxu0
        %v494 = vadd.f32 %v405, %v493
        %v495 = vpop.f32.mrf.mxu0
        %v496 = vadd.f32 %v405, %v495
        %497 = vmatmul.bf16.gmra.mxu0 %v386
        %v498 = vpop.f32.mrf.mxu0
        %v499 = vadd.f32 %v405, %v498
        %v500 = vpop.f32.mrf.mxu0
        %v501 = vadd.f32 %v405, %v500
        %502 = vdwg.mxu0
        %v503 = vmax.f32 %v464, 0.0
        %v504 = vmax.f32 %v466, 0.0
        %v505 = vmax.f32 %v469, 0.0
        %v506 = vmax.f32 %v471, 0.0
        %v507 = vmax.f32 %v474, 0.0
        %v508 = vmax.f32 %v476, 0.0
        %v509 = vmax.f32 %v479, 0.0
        %v510 = vmax.f32 %v481, 0.0
        %v511 = vmax.f32 %v484, 0.0
        %v512 = vmax.f32 %v486, 0.0
        %v513 = vmax.f32 %v489, 0.0
        %v514 = vmax.f32 %v491, 0.0
        %v515 = vmax.f32 %v494, 0.0
        %v516 = vmax.f32 %v496, 0.0
        %v517 = vmax.f32 %v499, 0.0
        %v518 = vmax.f32 %v501, 0.0
        %v519 = vpack.c.bf16 %v504, %v503
        %v520 = vpack.c.bf16 %v506, %v505
        %v521 = vpack.c.bf16 %v508, %v507
        %v522 = vpack.c.bf16 %v510, %v509
        %v523 = vpack.c.bf16 %v512, %v511
        %v524 = vpack.c.bf16 %v514, %v513
        %v525 = vpack.c.bf16 %v516, %v515
        %v526 = vpack.c.bf16 %v518, %v517
        %s527 = scalar_lea.vmem [#allocation5], 128
        %v528 = vld [vmem:[%s527] sm:$0xf]
        %v529 = vld [vmem:[%s527 + $0x4] sm:$0xf]
        %v530 = vld [vmem:[%s527 + $0x8] sm:$0xf]
        %v531 = vld [vmem:[%s527 + $0xc] sm:$0xf]
        %v532 = vld [vmem:[%s527 + $0x10] sm:$0xf]
        %v533 = vld [vmem:[%s527 + $0x14] sm:$0xf]
        %v534 = vld [vmem:[%s527 + $0x18] sm:$0xf]
        %v535 = vld [vmem:[%s527 + $0x1c] sm:$0xf]
        %v536 = vld [vmem:[%s527 + $0x20] sm:$0xf]
        %v537 = vld [vmem:[%s527 + $0x24] sm:$0xf]
        %v538 = vld [vmem:[%s527 + $0x28] sm:$0xf]
        %v539 = vld [vmem:[%s527 + $0x2c] sm:$0xf]
        %v540 = vld [vmem:[%s527 + $0x30] sm:$0xf]
        %v541 = vld [vmem:[%s527 + $0x34] sm:$0xf]
        %v542 = vld [vmem:[%s527 + $0x38] sm:$0xf]
        %v543 = vld [vmem:[%s527 + $0x3c] sm:$0xf]
        %v544 = vld [vmem:[#allocation7 + $0x2] sm:$0x1]
        %v545 = vperm.slane %v544, 0
        %v562 = vunpack.c.l.b16 %v528
        %v563 = vunpack.c.l.b16 %v529
        %v564 = vunpack.c.l.b16 %v530
        %v565 = vunpack.c.l.b16 %v531
        %v566 = vunpack.c.l.b16 %v532
        %v567 = vunpack.c.l.b16 %v533
        %v568 = vunpack.c.l.b16 %v534
        %v569 = vunpack.c.l.b16 %v535
        %v570 = vunpack.c.l.b16 %v536
        %v571 = vunpack.c.l.b16 %v537
        %v572 = vunpack.c.l.b16 %v538
        %v573 = vunpack.c.l.b16 %v539
        %v574 = vunpack.c.l.b16 %v540
        %v575 = vunpack.c.l.b16 %v541
        %v576 = vunpack.c.l.b16 %v542
        %v577 = vunpack.c.l.b16 %v543
        %v578 = vpack.c.b16 %v563, %v562
        %v579 = vpack.c.b16 %v565, %v564
        %v580 = vpack.c.b16 %v567, %v566
        %v581 = vpack.c.b16 %v569, %v568
        %v582 = vpack.c.b16 %v571, %v570
        %v583 = vpack.c.b16 %v573, %v572
        %v584 = vpack.c.b16 %v575, %v574
        %v585 = vpack.c.b16 %v577, %v576
        %594 = vmatpush.bf16.msra.mxu0 %v585
        %595 = vmatpush.bf16.msra.mxu0 %v584
        %596 = vmatpush.bf16.msra.mxu0 %v583
        %597 = vmatpush.bf16.msra.mxu0 %v582
        %598 = vmatpush.bf16.msra.mxu0 %v581
        %599 = vmatpush.bf16.msra.mxu0 %v580
        %600 = vmatpush.bf16.msra.mxu0 %v579
        %601 = vmatpush.bf16.msra.mxu0 %v578
        %602 = vmatmul.bf16.gmra.mxu0 %v519
        %v603 = vpop.f32.mrf.mxu0
        %v604 = vadd.f32 %v545, %v603
        %v605 = vpop.f32.mrf.mxu0
        %v606 = vadd.f32 %v545, %v605
        %607 = vmatmul.bf16.gmra.mxu0 %v520
        %v608 = vpop.f32.mrf.mxu0
        %v609 = vadd.f32 %v545, %v608
        %v610 = vpop.f32.mrf.mxu0
        %v611 = vadd.f32 %v545, %v610
        %612 = vmatmul.bf16.gmra.mxu0 %v521
        %v613 = vpop.f32.mrf.mxu0
        %v614 = vadd.f32 %v545, %v613
        %v615 = vpop.f32.mrf.mxu0
        %v616 = vadd.f32 %v545, %v615
        %617 = vmatmul.bf16.gmra.mxu0 %v522
        %v618 = vpop.f32.mrf.mxu0
        %v619 = vadd.f32 %v545, %v618
        %v620 = vpop.f32.mrf.mxu0
        %v621 = vadd.f32 %v545, %v620
        %622 = vmatmul.bf16.gmra.mxu0 %v523
        %v623 = vpop.f32.mrf.mxu0
        %v624 = vadd.f32 %v545, %v623
        %v625 = vpop.f32.mrf.mxu0
        %v626 = vadd.f32 %v545, %v625
        %627 = vmatmul.bf16.gmra.mxu0 %v524
        %v628 = vpop.f32.mrf.mxu0
        %v629 = vadd.f32 %v545, %v628
        %v630 = vpop.f32.mrf.mxu0
        %v631 = vadd.f32 %v545, %v630
        %632 = vmatmul.bf16.gmra.mxu0 %v525
        %v633 = vpop.f32.mrf.mxu0
        %v634 = vadd.f32 %v545, %v633
        %v635 = vpop.f32.mrf.mxu0
        %v636 = vadd.f32 %v545, %v635
        %637 = vmatmul.bf16.gmra.mxu0 %v526
        %v638 = vpop.f32.mrf.mxu0
        %v639 = vadd.f32 %v545, %v638
        %v640 = vpop.f32.mrf.mxu0
        %v641 = vadd.f32 %v545, %v640
        %642 = vdwg.mxu0
        %v643 = vmax.f32 %v604, 0.0
        %v644 = vmax.f32 %v606, 0.0
        %v645 = vmax.f32 %v609, 0.0
        %v646 = vmax.f32 %v611, 0.0
        %v647 = vmax.f32 %v614, 0.0
        %v648 = vmax.f32 %v616, 0.0
        %v649 = vmax.f32 %v619, 0.0
        %v650 = vmax.f32 %v621, 0.0
        %v651 = vmax.f32 %v624, 0.0
        %v652 = vmax.f32 %v626, 0.0
        %v653 = vmax.f32 %v629, 0.0
        %v654 = vmax.f32 %v631, 0.0
        %v655 = vmax.f32 %v634, 0.0
        %v656 = vmax.f32 %v636, 0.0
        %v657 = vmax.f32 %v639, 0.0
        %v658 = vmax.f32 %v641, 0.0
        %v659 = vpack.c.bf16 %v644, %v643
        %v660 = vpack.c.bf16 %v646, %v645
        %v661 = vpack.c.bf16 %v648, %v647
        %v662 = vpack.c.bf16 %v650, %v649
        %v663 = vpack.c.bf16 %v652, %v651
        %v664 = vpack.c.bf16 %v654, %v653
        %v665 = vpack.c.bf16 %v656, %v655
        %v666 = vpack.c.bf16 %v658, %v657
        %s667 = scalar_lea.vmem [#allocation5], 192
        %v668 = vld [vmem:[%s667] sm:$0xf]
        %v669 = vld [vmem:[%s667 + $0x4] sm:$0xf]
        %v670 = vld [vmem:[%s667 + $0x8] sm:$0xf]
        %v671 = vld [vmem:[%s667 + $0xc] sm:$0xf]
        %v672 = vld [vmem:[%s667 + $0x10] sm:$0xf]
        %v673 = vld [vmem:[%s667 + $0x14] sm:$0xf]
        %v674 = vld [vmem:[%s667 + $0x18] sm:$0xf]
        %v675 = vld [vmem:[%s667 + $0x1c] sm:$0xf]
        %v676 = vld [vmem:[%s667 + $0x20] sm:$0xf]
        %v677 = vld [vmem:[%s667 + $0x24] sm:$0xf]
        %v678 = vld [vmem:[%s667 + $0x28] sm:$0xf]
        %v679 = vld [vmem:[%s667 + $0x2c] sm:$0xf]
        %v680 = vld [vmem:[%s667 + $0x30] sm:$0xf]
        %v681 = vld [vmem:[%s667 + $0x34] sm:$0xf]
        %v682 = vld [vmem:[%s667 + $0x38] sm:$0xf]
        %v683 = vld [vmem:[%s667 + $0x3c] sm:$0xf]
        %v684 = vld [vmem:[#allocation7 + $0x3] sm:$0x1]
        %v685 = vperm.slane %v684, 0
        %v702 = vunpack.c.l.b16 %v668
        %v703 = vunpack.c.l.b16 %v669
        %v704 = vunpack.c.l.b16 %v670
        %v705 = vunpack.c.l.b16 %v671
        %v706 = vunpack.c.l.b16 %v672
        %v707 = vunpack.c.l.b16 %v673
        %v708 = vunpack.c.l.b16 %v674
        %v709 = vunpack.c.l.b16 %v675
        %v710 = vunpack.c.l.b16 %v676
        %v711 = vunpack.c.l.b16 %v677
        %v712 = vunpack.c.l.b16 %v678
        %v713 = vunpack.c.l.b16 %v679
        %v714 = vunpack.c.l.b16 %v680
        %v715 = vunpack.c.l.b16 %v681
        %v716 = vunpack.c.l.b16 %v682
        %v717 = vunpack.c.l.b16 %v683
        %v718 = vpack.c.b16 %v703, %v702
        %v719 = vpack.c.b16 %v705, %v704
        %v720 = vpack.c.b16 %v707, %v706
        %v721 = vpack.c.b16 %v709, %v708
        %v722 = vpack.c.b16 %v711, %v710
        %v723 = vpack.c.b16 %v713, %v712
        %v724 = vpack.c.b16 %v715, %v714
        %v725 = vpack.c.b16 %v717, %v716
        %734 = vmatpush.bf16.msra.mxu0 %v725
        %735 = vmatpush.bf16.msra.mxu0 %v724
        %736 = vmatpush.bf16.msra.mxu0 %v723
        %737 = vmatpush.bf16.msra.mxu0 %v722
        %738 = vmatpush.bf16.msra.mxu0 %v721
        %739 = vmatpush.bf16.msra.mxu0 %v720
        %740 = vmatpush.bf16.msra.mxu0 %v719
        %741 = vmatpush.bf16.msra.mxu0 %v718
        %742 = vmatmul.bf16.gmra.mxu0 %v659
        %v743 = vpop.f32.mrf.mxu0
        %v744 = vadd.f32 %v685, %v743
        %v745 = vpop.f32.mrf.mxu0
        %v746 = vadd.f32 %v685, %v745
        %747 = vmatmul.bf16.gmra.mxu0 %v660
        %v748 = vpop.f32.mrf.mxu0
        %v749 = vadd.f32 %v685, %v748
        %v750 = vpop.f32.mrf.mxu0
        %v751 = vadd.f32 %v685, %v750
        %752 = vmatmul.bf16.gmra.mxu0 %v661
        %v753 = vpop.f32.mrf.mxu0
        %v754 = vadd.f32 %v685, %v753
        %v755 = vpop.f32.mrf.mxu0
        %v756 = vadd.f32 %v685, %v755
        %757 = vmatmul.bf16.gmra.mxu0 %v662
        %v758 = vpop.f32.mrf.mxu0
        %v759 = vadd.f32 %v685, %v758
        %v760 = vpop.f32.mrf.mxu0
        %v761 = vadd.f32 %v685, %v760
        %762 = vmatmul.bf16.gmra.mxu0 %v663
        %v763 = vpop.f32.mrf.mxu0
        %v764 = vadd.f32 %v685, %v763
        %v765 = vpop.f32.mrf.mxu0
        %v766 = vadd.f32 %v685, %v765
        %767 = vmatmul.bf16.gmra.mxu0 %v664
        %v768 = vpop.f32.mrf.mxu0
        %v769 = vadd.f32 %v685, %v768
        %v770 = vpop.f32.mrf.mxu0
        %v771 = vadd.f32 %v685, %v770
        %772 = vmatmul.bf16.gmra.mxu0 %v665
        %v773 = vpop.f32.mrf.mxu0
        %v774 = vadd.f32 %v685, %v773
        %v775 = vpop.f32.mrf.mxu0
        %v776 = vadd.f32 %v685, %v775
        %777 = vmatmul.bf16.gmra.mxu0 %v666
        %v778 = vpop.f32.mrf.mxu0
        %v779 = vadd.f32 %v685, %v778
        %v780 = vpop.f32.mrf.mxu0
        %v781 = vadd.f32 %v685, %v780
        %782 = vdwg.mxu0
        %v783 = vmax.f32 %v744, 0.0
        %v784 = vmax.f32 %v746, 0.0
        %v785 = vmax.f32 %v749, 0.0
        %v786 = vmax.f32 %v751, 0.0
        %v787 = vmax.f32 %v754, 0.0
        %v788 = vmax.f32 %v756, 0.0
        %v789 = vmax.f32 %v759, 0.0
        %v790 = vmax.f32 %v761, 0.0
        %v791 = vmax.f32 %v764, 0.0
        %v792 = vmax.f32 %v766, 0.0
        %v793 = vmax.f32 %v769, 0.0
        %v794 = vmax.f32 %v771, 0.0
        %v795 = vmax.f32 %v774, 0.0
        %v796 = vmax.f32 %v776, 0.0
        %v797 = vmax.f32 %v779, 0.0
        %v798 = vmax.f32 %v781, 0.0
        %v799 = vpack.c.bf16 %v784, %v783
        %v800 = vpack.c.bf16 %v786, %v785
        %v801 = vpack.c.bf16 %v788, %v787
        %v802 = vpack.c.bf16 %v790, %v789
        %v803 = vpack.c.bf16 %v792, %v791
        %v804 = vpack.c.bf16 %v794, %v793
        %v805 = vpack.c.bf16 %v796, %v795
        %v806 = vpack.c.bf16 %v798, %v797
        %s807 = scalar_lea.vmem [#allocation5], 256
        %v808 = vld [vmem:[%s807] sm:$0xf]
        %v809 = vld [vmem:[%s807 + $0x4] sm:$0xf]
        %v810 = vld [vmem:[%s807 + $0x8] sm:$0xf]
        %v811 = vld [vmem:[%s807 + $0xc] sm:$0xf]
        %v812 = vld [vmem:[%s807 + $0x10] sm:$0xf]
        %v813 = vld [vmem:[%s807 + $0x14] sm:$0xf]
        %v814 = vld [vmem:[%s807 + $0x18] sm:$0xf]
        %v815 = vld [vmem:[%s807 + $0x1c] sm:$0xf]
        %v816 = vld [vmem:[%s807 + $0x20] sm:$0xf]
        %v817 = vld [vmem:[%s807 + $0x24] sm:$0xf]
        %v818 = vld [vmem:[%s807 + $0x28] sm:$0xf]
        %v819 = vld [vmem:[%s807 + $0x2c] sm:$0xf]
        %v820 = vld [vmem:[%s807 + $0x30] sm:$0xf]
        %v821 = vld [vmem:[%s807 + $0x34] sm:$0xf]
        %v822 = vld [vmem:[%s807 + $0x38] sm:$0xf]
        %v823 = vld [vmem:[%s807 + $0x3c] sm:$0xf]
        %v824 = vld [vmem:[#allocation7 + $0x4] sm:$0x1]
        %v825 = vperm.slane %v824, 0
        %v842 = vunpack.c.l.b16 %v808
        %v843 = vunpack.c.l.b16 %v809
        %v844 = vunpack.c.l.b16 %v810
        %v845 = vunpack.c.l.b16 %v811
        %v846 = vunpack.c.l.b16 %v812
        %v847 = vunpack.c.l.b16 %v813
        %v848 = vunpack.c.l.b16 %v814
        %v849 = vunpack.c.l.b16 %v815
        %v850 = vunpack.c.l.b16 %v816
        %v851 = vunpack.c.l.b16 %v817
        %v852 = vunpack.c.l.b16 %v818
        %v853 = vunpack.c.l.b16 %v819
        %v854 = vunpack.c.l.b16 %v820
        %v855 = vunpack.c.l.b16 %v821
        %v856 = vunpack.c.l.b16 %v822
        %v857 = vunpack.c.l.b16 %v823
        %v858 = vpack.c.b16 %v843, %v842
        %v859 = vpack.c.b16 %v845, %v844
        %v860 = vpack.c.b16 %v847, %v846
        %v861 = vpack.c.b16 %v849, %v848
        %v862 = vpack.c.b16 %v851, %v850
        %v863 = vpack.c.b16 %v853, %v852
        %v864 = vpack.c.b16 %v855, %v854
        %v865 = vpack.c.b16 %v857, %v856
        %874 = vmatpush.bf16.msra.mxu0 %v865
        %875 = vmatpush.bf16.msra.mxu0 %v864
        %876 = vmatpush.bf16.msra.mxu0 %v863
        %877 = vmatpush.bf16.msra.mxu0 %v862
        %878 = vmatpush.bf16.msra.mxu0 %v861
        %879 = vmatpush.bf16.msra.mxu0 %v860
        %880 = vmatpush.bf16.msra.mxu0 %v859
        %881 = vmatpush.bf16.msra.mxu0 %v858
        %882 = vmatmul.bf16.gmra.mxu0 %v799
        %v883 = vpop.f32.mrf.mxu0
        %v884 = vadd.f32 %v825, %v883
        %v885 = vpop.f32.mrf.mxu0
        %v886 = vadd.f32 %v825, %v885
        %887 = vmatmul.bf16.gmra.mxu0 %v800
        %v888 = vpop.f32.mrf.mxu0
        %v889 = vadd.f32 %v825, %v888
        %v890 = vpop.f32.mrf.mxu0
        %v891 = vadd.f32 %v825, %v890
        %892 = vmatmul.bf16.gmra.mxu0 %v801
        %v893 = vpop.f32.mrf.mxu0
        %v894 = vadd.f32 %v825, %v893
        %v895 = vpop.f32.mrf.mxu0
        %v896 = vadd.f32 %v825, %v895
        %897 = vmatmul.bf16.gmra.mxu0 %v802
        %v898 = vpop.f32.mrf.mxu0
        %v899 = vadd.f32 %v825, %v898
        %v900 = vpop.f32.mrf.mxu0
        %v901 = vadd.f32 %v825, %v900
        %902 = vmatmul.bf16.gmra.mxu0 %v803
        %v903 = vpop.f32.mrf.mxu0
        %v904 = vadd.f32 %v825, %v903
        %v905 = vpop.f32.mrf.mxu0
        %v906 = vadd.f32 %v825, %v905
        %907 = vmatmul.bf16.gmra.mxu0 %v804
        %v908 = vpop.f32.mrf.mxu0
        %v909 = vadd.f32 %v825, %v908
        %v910 = vpop.f32.mrf.mxu0
        %v911 = vadd.f32 %v825, %v910
        %912 = vmatmul.bf16.gmra.mxu0 %v805
        %v913 = vpop.f32.mrf.mxu0
        %v914 = vadd.f32 %v825, %v913
        %v915 = vpop.f32.mrf.mxu0
        %v916 = vadd.f32 %v825, %v915
        %917 = vmatmul.bf16.gmra.mxu0 %v806
        %v918 = vpop.f32.mrf.mxu0
        %v919 = vadd.f32 %v825, %v918
        %v920 = vpop.f32.mrf.mxu0
        %v921 = vadd.f32 %v825, %v920
        %922 = vdwg.mxu0
        %923 = vmax.xlane.f32.xlu0 %v884
        %v924 = vpop.xlane.xlu0 %923
        %925 = vmax.xlane.f32.xlu0 %v886
        %v926 = vpop.xlane.xlu0 %925
        %927 = vmax.xlane.f32.xlu0 %v889
        %v928 = vpop.xlane.xlu0 %927
        %929 = vmax.xlane.f32.xlu0 %v891
        %v930 = vpop.xlane.xlu0 %929
        %931 = vmax.xlane.f32.xlu0 %v894
        %v932 = vpop.xlane.xlu0 %931
        %933 = vmax.xlane.f32.xlu0 %v896
        %v934 = vpop.xlane.xlu0 %933
        %935 = vmax.xlane.f32.xlu0 %v899
        %v936 = vpop.xlane.xlu0 %935
        %937 = vmax.xlane.f32.xlu0 %v901
        %v938 = vpop.xlane.xlu0 %937
        %939 = vmax.xlane.f32.xlu0 %v904
        %v940 = vpop.xlane.xlu0 %939
        %941 = vmax.xlane.f32.xlu0 %v906
        %v942 = vpop.xlane.xlu0 %941
        %943 = vmax.xlane.f32.xlu0 %v909
        %v944 = vpop.xlane.xlu0 %943
        %945 = vmax.xlane.f32.xlu0 %v911
        %v946 = vpop.xlane.xlu0 %945
        %947 = vmax.xlane.f32.xlu0 %v914
        %v948 = vpop.xlane.xlu0 %947
        %949 = vmax.xlane.f32.xlu0 %v916
        %v950 = vpop.xlane.xlu0 %949
        %951 = vmax.xlane.f32.xlu0 %v919
        %v952 = vpop.xlane.xlu0 %951
        %953 = vmax.xlane.f32.xlu0 %v921
        %v954 = vpop.xlane.xlu0 %953
        %v955 = vsub.f32 %v884, %v924
        %v956 = vsub.f32 %v886, %v926
        %v957 = vsub.f32 %v889, %v928
        %v958 = vsub.f32 %v891, %v930
        %v959 = vsub.f32 %v894, %v932
        %v960 = vsub.f32 %v896, %v934
        %v961 = vsub.f32 %v899, %v936
        %v962 = vsub.f32 %v901, %v938
        %v963 = vsub.f32 %v904, %v940
        %v964 = vsub.f32 %v906, %v942
        %v965 = vsub.f32 %v909, %v944
        %v966 = vsub.f32 %v911, %v946
        %v967 = vsub.f32 %v914, %v948
        %v968 = vsub.f32 %v916, %v950
        %v969 = vsub.f32 %v919, %v952
        %v970 = vsub.f32 %v921, %v954
        %v971 = vmul.f32 %v955, 1.442695
        %v972 = vpow.pop %v971
        %v973 = vmul.f32 %v956, 1.442695
        %v974 = vpow.pop %v973
        %v975 = vmul.f32 %v957, 1.442695
        %v976 = vpow.pop %v975
        %v977 = vmul.f32 %v958, 1.442695
        %v978 = vpow.pop %v977
        %v979 = vmul.f32 %v959, 1.442695
        %v980 = vpow.pop %v979
        %v981 = vmul.f32 %v960, 1.442695
        %v982 = vpow.pop %v981
        %v983 = vmul.f32 %v961, 1.442695
        %v984 = vpow.pop %v983
        %v985 = vmul.f32 %v962, 1.442695
        %v986 = vpow.pop %v985
        %v987 = vmul.f32 %v963, 1.442695
        %v988 = vpow.pop %v987
        %v989 = vmul.f32 %v964, 1.442695
        %v990 = vpow.pop %v989
        %v991 = vmul.f32 %v965, 1.442695
        %v992 = vpow.pop %v991
        %v993 = vmul.f32 %v966, 1.442695
        %v994 = vpow.pop %v993
        %v995 = vmul.f32 %v967, 1.442695
        %v996 = vpow.pop %v995
        %v997 = vmul.f32 %v968, 1.442695
        %v998 = vpow.pop %v997
        %v999 = vmul.f32 %v969, 1.442695
        %v1000 = vpow.pop %v999
        %v1001 = vmul.f32 %v970, 1.442695
        %v1002 = vpow.pop %v1001
        %1003 = vadd.xlane.f32.xlu0 %v972
        %v1004 = vpop.xlane.xlu0 %1003
        %1005 = vadd.xlane.f32.xlu0 %v974
        %v1006 = vpop.xlane.xlu0 %1005
        %1007 = vadd.xlane.f32.xlu0 %v976
        %v1008 = vpop.xlane.xlu0 %1007
        %1009 = vadd.xlane.f32.xlu0 %v978
        %v1010 = vpop.xlane.xlu0 %1009
        %1011 = vadd.xlane.f32.xlu0 %v980
        %v1012 = vpop.xlane.xlu0 %1011
        %1013 = vadd.xlane.f32.xlu0 %v982
        %v1014 = vpop.xlane.xlu0 %1013
        %1015 = vadd.xlane.f32.xlu0 %v984
        %v1016 = vpop.xlane.xlu0 %1015
        %1017 = vadd.xlane.f32.xlu0 %v986
        %v1018 = vpop.xlane.xlu0 %1017
        %1019 = vadd.xlane.f32.xlu0 %v988
        %v1020 = vpop.xlane.xlu0 %1019
        %1021 = vadd.xlane.f32.xlu0 %v990
        %v1022 = vpop.xlane.xlu0 %1021
        %1023 = vadd.xlane.f32.xlu0 %v992
        %v1024 = vpop.xlane.xlu0 %1023
        %1025 = vadd.xlane.f32.xlu0 %v994
        %v1026 = vpop.xlane.xlu0 %1025
        %1027 = vadd.xlane.f32.xlu0 %v996
        %v1028 = vpop.xlane.xlu0 %1027
        %1029 = vadd.xlane.f32.xlu0 %v998
        %v1030 = vpop.xlane.xlu0 %1029
        %1031 = vadd.xlane.f32.xlu0 %v1000
        %v1032 = vpop.xlane.xlu0 %1031
        %1033 = vadd.xlane.f32.xlu0 %v1002
        %v1034 = vpop.xlane.xlu0 %1033
        %v1035 = vrcp.pop %v1004
        %v1036 = vrcp.pop %v1006
        %v1037 = vrcp.pop %v1008
        %v1038 = vrcp.pop %v1010
        %v1039 = vrcp.pop %v1012
        %v1040 = vrcp.pop %v1014
        %v1041 = vrcp.pop %v1016
        %v1042 = vrcp.pop %v1018
        %v1043 = vrcp.pop %v1020
        %v1044 = vrcp.pop %v1022
        %v1045 = vrcp.pop %v1024
        %v1046 = vrcp.pop %v1026
        %v1047 = vrcp.pop %v1028
        %v1048 = vrcp.pop %v1030
        %v1049 = vrcp.pop %v1032
        %v1050 = vrcp.pop %v1034
        %v1051 = vmul.f32 %v972, %v1035
        %v1052 = vmul.f32 %v974, %v1036
        %v1053 = vmul.f32 %v976, %v1037
        %v1054 = vmul.f32 %v978, %v1038
        %v1055 = vmul.f32 %v980, %v1039
        %v1056 = vmul.f32 %v982, %v1040
        %v1057 = vmul.f32 %v984, %v1041
        %v1058 = vmul.f32 %v986, %v1042
        %v1059 = vmul.f32 %v988, %v1043
        %v1060 = vmul.f32 %v990, %v1044
        %v1061 = vmul.f32 %v992, %v1045
        %v1062 = vmul.f32 %v994, %v1046
        %v1063 = vmul.f32 %v996, %v1047
        %v1064 = vmul.f32 %v998, %v1048
        %v1065 = vmul.f32 %v1000, %v1049
        %v1066 = vmul.f32 %v1002, %v1050
        %1067 = vst [vmem:[%s221] sm:$0xff] %v1051
        %1068 = vst [vmem:[%s221 + $0x8] sm:$0xff] %v1052
        %1069 = vst [vmem:[%s221 + $0x10] sm:$0xff] %v1053
        %1070 = vst [vmem:[%s221 + $0x18] sm:$0xff] %v1054
        %1071 = vst [vmem:[%s221 + $0x20] sm:$0xff] %v1055
        %1072 = vst [vmem:[%s221 + $0x28] sm:$0xff] %v1056
        %1073 = vst [vmem:[%s221 + $0x30] sm:$0xff] %v1057
        %1074 = vst [vmem:[%s221 + $0x38] sm:$0xff] %v1058
        %1075 = vst [vmem:[%s221 + $0x40] sm:$0xff] %v1059
        %1076 = vst [vmem:[%s221 + $0x48] sm:$0xff] %v1060
        %1077 = vst [vmem:[%s221 + $0x50] sm:$0xff] %v1061
        %1078 = vst [vmem:[%s221 + $0x58] sm:$0xff] %v1062
        %1079 = vst [vmem:[%s221 + $0x60] sm:$0xff] %v1063
        %1080 = vst [vmem:[%s221 + $0x68] sm:$0xff] %v1064
        %1081 = vst [vmem:[%s221 + $0x70] sm:$0xff] %v1065
        %1082 = vst [vmem:[%s221 + $0x78] sm:$0xff] %v1066
        %s1083 = sand.u32 %s97, 1
        %s1084 = scalar_lea.sflag [#allocation4], %s1083
        %s1085 = sand.u32 %s97, 1
        %s1086 = smul.addr %s1085, 128
        %s1087 = scalar_lea.vmem [#allocation8], %s1086
        // Predicated region
        $region45: #{tpu_custom_call.1} parent=31 // pred_check
          %p1088 = pneg %p107
        $region46: #{tpu_custom_call.1} parent=31 // pred_check_branch
          %1090 = sbr.rel (%p1088) target = $region48
        $region47: #{tpu_custom_call.1} parent=31 // pred_region
          %s1091 = smul.u32 16, %s21
          %1093 = vsyncadd %s1084, 0
          %s1094 = smul.addr %s1091, 8
          %s1095 = scalar_lea.hbm %s3, %s1094
          %s1096 = sshll.u32 %s1087, 4
          %s1097 = int_to_ptr.vmem [resolvable:$true] %s1096
          %s1098 = sshll.u32 %s1095, 4
          %s1099 = int_to_ptr.hbm [resolvable:$true] %s1098
          %1104 = dma.vmem_to_hbm [thread:$0]  %s1097, 2048, %s1099, %s1084, 128, 128, 8
        $region48: #{tpu_custom_call.1} parent=31 // pred_fallthru
          _
      $region32: #{tpu_custom_call.1} parent=5 // pred_fallthru
        _
      %p1105 = scmp.le.s32.totalorder 2, %s16
      // Predicated region
      $region49: #{tpu_custom_call.1} parent=5 // pred_check
        %p1106 = pneg %p1105
      $region50: #{tpu_custom_call.1} parent=5 // pred_check_branch
        %1108 = sbr.rel (%p1106) target = $region52
      $region51: #{tpu_custom_call.1} parent=5 // pred_region
        %s1109 = ssub.s32 %s16, 2
        // Predicated region
        $region53: #{tpu_custom_call.1} parent=51 // pred_check
          %p1110 = pneg %p113
        $region54: #{tpu_custom_call.1} parent=51 // pred_check_branch
          %1112 = sbr.rel (%p1110) target = $region56
        $region55: #{tpu_custom_call.1} parent=51 // pred_region
          %s1113 = sand.u32 %s98, 1
          %s1114 = scalar_lea.sflag [#allocation4], %s1113
          %s1115 = sand.u32 %s98, 1
          %s1116 = smul.addr %s1115, 128
          %s1117 = scalar_lea.vmem [#allocation8], %s1116
          %1119 = dma.done %s1114, 2048
        $region56: #{tpu_custom_call.1} parent=51 // pred_fallthru
          _
      $region52: #{tpu_custom_call.1} parent=5 // pred_fallthru
        _
    $region6: #{tpu_custom_call.1} parent=1 // loop_footer
      %s20 = sadd.s32 1, %s16
    $region7: #{tpu_custom_call.1} parent=1 // loop_footer_branch
      %15 = sbr.rel target = $region3
    $region8: #{tpu_custom_call.1} parent=1 // loop_exit
      _
    %1120 = vsyncpa [#allocation3], 1
    %s1121 = scalar_lea.sflag [#allocation3], 1
    %1122 = vsyncpa %s1121, 1
    %1123 = vsyncpa [#allocation6], 1
    %1124 = vsyncpa [#allocation4], 1
    %s1125 = scalar_lea.sflag [#allocation4], 1
    %1126 = vsyncpa %s1125, 1

</llo_original>
